<compile_context>
chip_gen: v7x
topology: tpu7x:2x2x1
jax: 0.10.0
libtpu: 0.0.40
codegen_flags: <defaults>
</compile_context>

<pallas_src>
import functools

import jax
import jax.numpy as jnp
from jax.experimental import pallas as pl
from jax.experimental.pallas import tpu as pltpu

BN_EPS = 1e-5
LANE = 128
SUBLANE = 8


def _round_up(n, m):
    return (n + m - 1) // m * m


def three_network_kernel(
    x_ref,
    w1_ref, g1_ref, be1_ref,
    w2_ref, g2_ref, be2_ref,
    w3_ref, b3_ref, g3_ref, be3_ref,
    out_ref,
    *, n_true, compute_dtype,
):
    n_pad = x_ref.shape[0]
    inv_n = jnp.float32(1.0 / n_true)

    # Row mask for batch padding: padded rows must stay exactly zero going into
    # every matmul so they contribute nothing to the BN sums (biases are
    # omitted, so a zero input row yields a zero matmul row).
    if n_pad != n_true:
        row_ids = jax.lax.broadcasted_iota(jnp.int32, (n_pad, 1), 0)
        row_mask = row_ids < n_true
    else:
        row_mask = None

    def mask_rows(h):
        if row_mask is None:
            return h
        return jnp.where(row_mask, h, 0.0)

    def matmul(h, w_ref):
        # Pre-BN biases intentionally omitted (they cancel under training BN).
        # compute_dtype=bf16 is an option for large D on v6e/v7x; accumulation
        # is always f32.
        return jnp.dot(
            h.astype(compute_dtype),
            w_ref[...].astype(compute_dtype),
            preferred_element_type=jnp.float32,
        )

    def batchnorm(h, g_ref, be_ref):
        # training-mode BatchNorm1d (biased variance), single-pass stats,
        # fused into a single per-feature scale/shift.  Padded rows of h are
        # exactly zero, so sums divided by the true batch size are correct.
        s = jnp.sum(h, axis=0, keepdims=True)
        sq = jnp.sum(h * h, axis=0, keepdims=True)
        mean = s * inv_n
        var = jnp.maximum(sq * inv_n - mean * mean, 0.0)
        scale = g_ref[...] * jax.lax.rsqrt(var + BN_EPS)
        shift = be_ref[...] - mean * scale
        return h * scale + shift

    def sigmoid(h):
        # sigmoid(x) == 0.5 * tanh(0.5 * x) + 0.5  (one EUP op instead of two)
        return 0.5 * jnp.tanh(0.5 * h) + 0.5

    x = x_ref[...]
    h = mask_rows(jnp.tanh(batchnorm(matmul(x, w1_ref), g1_ref, be1_ref)))
    h = mask_rows(sigmoid(batchnorm(matmul(h, w2_ref), g2_ref, be2_ref)))
    h = mask_rows(sigmoid(batchnorm(matmul(h, w3_ref), g3_ref, be3_ref)))
    # final: layer3 applied a second time, with its bias (exactly as PyTorch)
    out_ref[...] = (matmul(h, w3_ref) + b3_ref[...]).astype(out_ref.dtype)


def three_network_forward(x, params, *, compute_dtype=jnp.float32):
    """x: (N, D) float32; params: dict of weights (see init_params).

    compute_dtype=jnp.bfloat16 enables native-rate MXU passes on v6e/v7x for
    large D (accumulation stays f32); default f32 matches PyTorch numerics.
    """
    N, D = x.shape
    Np = _round_up(N, SUBLANE)
    Dp = _round_up(D, LANE)
    pad_n = Np - N
    pad_d = Dp - D

    def pad_vec(v):      # (1, D) -> (1, Dp), zero-padded
        return jnp.pad(v, ((0, 0), (0, pad_d)))

    def pad_mat(w):      # (D, D) -> (Dp, Dp), zero-padded
        return jnp.pad(w, ((0, pad_d), (0, pad_d)))

    xp = jnp.pad(x, ((0, pad_n), (0, pad_d)))

    args = (
        xp,
        pad_mat(params["w1t"]), pad_vec(params["g1"]), pad_vec(params["be1"]),
        pad_mat(params["w2t"]), pad_vec(params["g2"]), pad_vec(params["be2"]),
        pad_mat(params["w3t"]), pad_vec(params["b3"]),
        pad_vec(params["g3"]), pad_vec(params["be3"]),
    )

    vmem = pl.BlockSpec(memory_space=pltpu.MemorySpace.VMEM)
    out_padded = pl.pallas_call(
        functools.partial(
            three_network_kernel, n_true=N, compute_dtype=compute_dtype),
        out_shape=jax.ShapeDtypeStruct((Np, Dp), jnp.float32),
        in_specs=[vmem] * len(args),
        out_specs=vmem,
        compiler_params=pltpu.CompilerParams(
            # 32 MiB is within the scoped default on every generation
            # (v7x physical VMEM is 64 MiB) and ample for the weight-resident
            # + whole-batch-activation footprint here.
            vmem_limit_bytes=32 * 1024 * 1024,
        ),
    )(*args)
    # TODO(synk): for N too large for VMEM residency, add a batch grid with a
    # two-phase (accumulate sum/sumsq, then normalize) pass per BN layer; a
    # single-pass tiled pipeline is impossible because training-mode BN needs
    # full-batch statistics before the next layer can run.
    return out_padded[:N, :D]


def init_params(key, input_dim):
    """Deterministic synthetic parameters matching nn.Linear / nn.BatchNorm1d shapes."""
    D = input_dim
    keys = jax.random.split(key, 6)
    bound = 1.0 / jnp.sqrt(D)

    def lin(kw, kb):
        w = jax.random.uniform(kw, (D, D), jnp.float32, -bound, bound)  # (out, in)
        b = jax.random.uniform(kb, (1, D), jnp.float32, -bound, bound)
        return w.T, b  # store transposed (in, out)

    w1t, b1 = lin(keys[0], keys[1])
    w2t, b2 = lin(keys[2], keys[3])
    w3t, b3 = lin(keys[4], keys[5])

    ones = jnp.ones((1, D), jnp.float32)
    zeros = jnp.zeros((1, D), jnp.float32)
    # BatchNorm1d default init: weight=1, bias=0.  b1/b2 are kept for the
    # reference model; the kernel provably does not need them (they cancel in BN).
    return dict(
        w1t=w1t, b1=b1, g1=ones, be1=zeros,
        w2t=w2t, b2=b2, g2=ones, be2=zeros,
        w3t=w3t, b3=b3, g3=ones, be3=zeros,
    )
    # TODO(synk): layer4 (D -> 1) exists in __init__ but is never used in forward, so it is omitted.


def reference_forward(x, p):
    """Pure-JAX reference with the original (bias-included) formulation."""

    def linear(h, wt, b):
        return h @ wt + b

    def bn(h, g, be):
        m = jnp.mean(h, axis=0, keepdims=True)
        v = jnp.mean((h - m) ** 2, axis=0, keepdims=True)
        return (h - m) / jnp.sqrt(v + BN_EPS) * g + be

    h = jnp.tanh(bn(linear(x, p["w1t"], p["b1"]), p["g1"], p["be1"]))
    h = jax.nn.sigmoid(bn(linear(h, p["w2t"], p["b2"]), p["g2"], p["be2"]))
    h = jax.nn.sigmoid(bn(linear(h, p["w3t"], p["b3"]), p["g3"], p["be3"]))
    return linear(h, p["w3t"], p["b3"])


if __name__ == "__main__":
    N, D = 8, 32  # batch=8, input_dim=32
    key = jax.random.PRNGKey(0)
    kx, kp = jax.random.split(key)
    x = jax.random.normal(kx, (N, D), jnp.float32)
    params = init_params(kp, D)

    out = three_network_forward(x, params)
    out = jax.block_until_ready(out)

    ref = reference_forward(x, params)
    assert out.shape == (N, D)
    assert jnp.allclose(out, ref, atol=1e-4, rtol=1e-4), "mismatch vs reference"
    print("KERNEL_OK")
</pallas_src>

<mosaic_0001>
module attributes {stable_mosaic.version = 11 : i64} {
  func.func @three_network_kernel(%arg0: memref<8x128xf32, #tpu.memory_space<vmem>>, %arg1: memref<128x128xf32, #tpu.memory_space<vmem>>, %arg2: memref<1x128xf32, #tpu.memory_space<vmem>>, %arg3: memref<1x128xf32, #tpu.memory_space<vmem>>, %arg4: memref<128x128xf32, #tpu.memory_space<vmem>>, %arg5: memref<1x128xf32, #tpu.memory_space<vmem>>, %arg6: memref<1x128xf32, #tpu.memory_space<vmem>>, %arg7: memref<128x128xf32, #tpu.memory_space<vmem>>, %arg8: memref<1x128xf32, #tpu.memory_space<vmem>>, %arg9: memref<1x128xf32, #tpu.memory_space<vmem>>, %arg10: memref<1x128xf32, #tpu.memory_space<vmem>>, %arg11: memref<8x128xf32, #tpu.memory_space<vmem>>) attributes {dimension_semantics = [], scalar_prefetch = 0 : i64, scratch_operands = 0 : i64, tpu.core_type = #tpu.core_type<tc>} {
    %c0 = arith.constant 0 : index
    %c0_0 = arith.constant 0 : index
    %0 = vector.load %arg0[%c0, %c0_0] : memref<8x128xf32, #tpu.memory_space<vmem>>, vector<8x128xf32>
    %c0_1 = arith.constant 0 : index
    %c0_2 = arith.constant 0 : index
    %1 = vector.load %arg1[%c0_1, %c0_2] : memref<128x128xf32, #tpu.memory_space<vmem>>, vector<128x128xf32>
    %cst = arith.constant dense<0.000000e+00> : vector<8x128xf32>
    %2 = tpu.matmul %0, %1, %cst {dimension_numbers = #tpu.dot_dimension_numbers<[1], [0], [0], [1], [0, 0, 1, 1], [], []>} : vector<8x128xf32>, vector<128x128xf32>, vector<8x128xf32> -> vector<8x128xf32>
    %cst_3 = arith.constant dense<0.000000e+00> : vector<128xf32>
    %3 = vector.multi_reduction <add>, %2, %cst_3 [0] : vector<8x128xf32> to vector<128xf32>
    %4 = vector.shape_cast %3 : vector<128xf32> to vector<1x128xf32>
    %5 = arith.mulf %2, %2 : vector<8x128xf32>
    %cst_4 = arith.constant dense<0.000000e+00> : vector<128xf32>
    %6 = vector.multi_reduction <add>, %5, %cst_4 [0] : vector<8x128xf32> to vector<128xf32>
    %7 = vector.shape_cast %6 : vector<128xf32> to vector<1x128xf32>
    %cst_5 = arith.constant 1.250000e-01 : f32
    %8 = vector.broadcast %cst_5 : f32 to vector<1x128xf32>
    %9 = arith.mulf %4, %8 : vector<1x128xf32>
    %cst_6 = arith.constant 1.250000e-01 : f32
    %10 = vector.broadcast %cst_6 : f32 to vector<1x128xf32>
    %11 = arith.mulf %7, %10 : vector<1x128xf32>
    %12 = arith.mulf %9, %9 : vector<1x128xf32>
    %13 = arith.subf %11, %12 : vector<1x128xf32>
    %cst_7 = arith.constant 0.000000e+00 : f32
    %14 = vector.broadcast %cst_7 : f32 to vector<1x128xf32>
    %15 = arith.maximumf %13, %14 : vector<1x128xf32>
    %c0_8 = arith.constant 0 : index
    %c0_9 = arith.constant 0 : index
    %16 = vector.load %arg2[%c0_8, %c0_9] : memref<1x128xf32, #tpu.memory_space<vmem>>, vector<1x128xf32>
    %cst_10 = arith.constant 9.99999974E-6 : f32
    %17 = vector.broadcast %cst_10 : f32 to vector<1x128xf32>
    %18 = arith.addf %15, %17 : vector<1x128xf32>
    %19 = math.rsqrt %18 : vector<1x128xf32>
    %20 = arith.mulf %16, %19 : vector<1x128xf32>
    %c0_11 = arith.constant 0 : index
    %c0_12 = arith.constant 0 : index
    %21 = vector.load %arg3[%c0_11, %c0_12] : memref<1x128xf32, #tpu.memory_space<vmem>>, vector<1x128xf32>
    %22 = arith.mulf %9, %20 : vector<1x128xf32>
    %23 = arith.subf %21, %22 : vector<1x128xf32>
    %24 = vector.broadcast %20 : vector<1x128xf32> to vector<8x128xf32>
    %25 = arith.mulf %2, %24 : vector<8x128xf32>
    %26 = vector.broadcast %23 : vector<1x128xf32> to vector<8x128xf32>
    %27 = arith.addf %25, %26 : vector<8x128xf32>
    %28 = math.tanh %27 : vector<8x128xf32>
    %c0_13 = arith.constant 0 : index
    %c0_14 = arith.constant 0 : index
    %29 = vector.load %arg4[%c0_13, %c0_14] : memref<128x128xf32, #tpu.memory_space<vmem>>, vector<128x128xf32>
    %cst_15 = arith.constant dense<0.000000e+00> : vector<8x128xf32>
    %30 = tpu.matmul %28, %29, %cst_15 {dimension_numbers = #tpu.dot_dimension_numbers<[1], [0], [0], [1], [0, 0, 1, 1], [], []>} : vector<8x128xf32>, vector<128x128xf32>, vector<8x128xf32> -> vector<8x128xf32>
    %cst_16 = arith.constant dense<0.000000e+00> : vector<128xf32>
    %31 = vector.multi_reduction <add>, %30, %cst_16 [0] : vector<8x128xf32> to vector<128xf32>
    %32 = vector.shape_cast %31 : vector<128xf32> to vector<1x128xf32>
    %33 = arith.mulf %30, %30 : vector<8x128xf32>
    %cst_17 = arith.constant dense<0.000000e+00> : vector<128xf32>
    %34 = vector.multi_reduction <add>, %33, %cst_17 [0] : vector<8x128xf32> to vector<128xf32>
    %35 = vector.shape_cast %34 : vector<128xf32> to vector<1x128xf32>
    %cst_18 = arith.constant 1.250000e-01 : f32
    %36 = vector.broadcast %cst_18 : f32 to vector<1x128xf32>
    %37 = arith.mulf %32, %36 : vector<1x128xf32>
    %cst_19 = arith.constant 1.250000e-01 : f32
    %38 = vector.broadcast %cst_19 : f32 to vector<1x128xf32>
    %39 = arith.mulf %35, %38 : vector<1x128xf32>
    %40 = arith.mulf %37, %37 : vector<1x128xf32>
    %41 = arith.subf %39, %40 : vector<1x128xf32>
    %cst_20 = arith.constant 0.000000e+00 : f32
    %42 = vector.broadcast %cst_20 : f32 to vector<1x128xf32>
    %43 = arith.maximumf %41, %42 : vector<1x128xf32>
    %c0_21 = arith.constant 0 : index
    %c0_22 = arith.constant 0 : index
    %44 = vector.load %arg5[%c0_21, %c0_22] : memref<1x128xf32, #tpu.memory_space<vmem>>, vector<1x128xf32>
    %cst_23 = arith.constant 9.99999974E-6 : f32
    %45 = vector.broadcast %cst_23 : f32 to vector<1x128xf32>
    %46 = arith.addf %43, %45 : vector<1x128xf32>
    %47 = math.rsqrt %46 : vector<1x128xf32>
    %48 = arith.mulf %44, %47 : vector<1x128xf32>
    %c0_24 = arith.constant 0 : index
    %c0_25 = arith.constant 0 : index
    %49 = vector.load %arg6[%c0_24, %c0_25] : memref<1x128xf32, #tpu.memory_space<vmem>>, vector<1x128xf32>
    %50 = arith.mulf %37, %48 : vector<1x128xf32>
    %51 = arith.subf %49, %50 : vector<1x128xf32>
    %52 = vector.broadcast %48 : vector<1x128xf32> to vector<8x128xf32>
    %53 = arith.mulf %30, %52 : vector<8x128xf32>
    %54 = vector.broadcast %51 : vector<1x128xf32> to vector<8x128xf32>
    %55 = arith.addf %53, %54 : vector<8x128xf32>
    %cst_26 = arith.constant 5.000000e-01 : f32
    %56 = vector.broadcast %cst_26 : f32 to vector<8x128xf32>
    %57 = arith.mulf %56, %55 : vector<8x128xf32>
    %58 = math.tanh %57 : vector<8x128xf32>
    %cst_27 = arith.constant 5.000000e-01 : f32
    %59 = vector.broadcast %cst_27 : f32 to vector<8x128xf32>
    %60 = arith.mulf %59, %58 : vector<8x128xf32>
    %cst_28 = arith.constant 5.000000e-01 : f32
    %61 = vector.broadcast %cst_28 : f32 to vector<8x128xf32>
    %62 = arith.addf %60, %61 : vector<8x128xf32>
    %c0_29 = arith.constant 0 : index
    %c0_30 = arith.constant 0 : index
    %63 = vector.load %arg7[%c0_29, %c0_30] : memref<128x128xf32, #tpu.memory_space<vmem>>, vector<128x128xf32>
    %cst_31 = arith.constant dense<0.000000e+00> : vector<8x128xf32>
    %64 = tpu.matmul %62, %63, %cst_31 {dimension_numbers = #tpu.dot_dimension_numbers<[1], [0], [0], [1], [0, 0, 1, 1], [], []>} : vector<8x128xf32>, vector<128x128xf32>, vector<8x128xf32> -> vector<8x128xf32>
    %cst_32 = arith.constant dense<0.000000e+00> : vector<128xf32>
    %65 = vector.multi_reduction <add>, %64, %cst_32 [0] : vector<8x128xf32> to vector<128xf32>
    %66 = vector.shape_cast %65 : vector<128xf32> to vector<1x128xf32>
    %67 = arith.mulf %64, %64 : vector<8x128xf32>
    %cst_33 = arith.constant dense<0.000000e+00> : vector<128xf32>
    %68 = vector.multi_reduction <add>, %67, %cst_33 [0] : vector<8x128xf32> to vector<128xf32>
    %69 = vector.shape_cast %68 : vector<128xf32> to vector<1x128xf32>
    %cst_34 = arith.constant 1.250000e-01 : f32
    %70 = vector.broadcast %cst_34 : f32 to vector<1x128xf32>
    %71 = arith.mulf %66, %70 : vector<1x128xf32>
    %cst_35 = arith.constant 1.250000e-01 : f32
    %72 = vector.broadcast %cst_35 : f32 to vector<1x128xf32>
    %73 = arith.mulf %69, %72 : vector<1x128xf32>
    %74 = arith.mulf %71, %71 : vector<1x128xf32>
    %75 = arith.subf %73, %74 : vector<1x128xf32>
    %cst_36 = arith.constant 0.000000e+00 : f32
    %76 = vector.broadcast %cst_36 : f32 to vector<1x128xf32>
    %77 = arith.maximumf %75, %76 : vector<1x128xf32>
    %c0_37 = arith.constant 0 : index
    %c0_38 = arith.constant 0 : index
    %78 = vector.load %arg9[%c0_37, %c0_38] : memref<1x128xf32, #tpu.memory_space<vmem>>, vector<1x128xf32>
    %cst_39 = arith.constant 9.99999974E-6 : f32
    %79 = vector.broadcast %cst_39 : f32 to vector<1x128xf32>
    %80 = arith.addf %77, %79 : vector<1x128xf32>
    %81 = math.rsqrt %80 : vector<1x128xf32>
    %82 = arith.mulf %78, %81 : vector<1x128xf32>
    %c0_40 = arith.constant 0 : index
    %c0_41 = arith.constant 0 : index
    %83 = vector.load %arg10[%c0_40, %c0_41] : memref<1x128xf32, #tpu.memory_space<vmem>>, vector<1x128xf32>
    %84 = arith.mulf %71, %82 : vector<1x128xf32>
    %85 = arith.subf %83, %84 : vector<1x128xf32>
    %86 = vector.broadcast %82 : vector<1x128xf32> to vector<8x128xf32>
    %87 = arith.mulf %64, %86 : vector<8x128xf32>
    %88 = vector.broadcast %85 : vector<1x128xf32> to vector<8x128xf32>
    %89 = arith.addf %87, %88 : vector<8x128xf32>
    %cst_42 = arith.constant 5.000000e-01 : f32
    %90 = vector.broadcast %cst_42 : f32 to vector<8x128xf32>
    %91 = arith.mulf %90, %89 : vector<8x128xf32>
    %92 = math.tanh %91 : vector<8x128xf32>
    %cst_43 = arith.constant 5.000000e-01 : f32
    %93 = vector.broadcast %cst_43 : f32 to vector<8x128xf32>
    %94 = arith.mulf %93, %92 : vector<8x128xf32>
    %cst_44 = arith.constant 5.000000e-01 : f32
    %95 = vector.broadcast %cst_44 : f32 to vector<8x128xf32>
    %96 = arith.addf %94, %95 : vector<8x128xf32>
    %c0_45 = arith.constant 0 : index
    %c0_46 = arith.constant 0 : index
    %97 = vector.load %arg7[%c0_45, %c0_46] : memref<128x128xf32, #tpu.memory_space<vmem>>, vector<128x128xf32>
    %cst_47 = arith.constant dense<0.000000e+00> : vector<8x128xf32>
    %98 = tpu.matmul %96, %97, %cst_47 {dimension_numbers = #tpu.dot_dimension_numbers<[1], [0], [0], [1], [0, 0, 1, 1], [], []>} : vector<8x128xf32>, vector<128x128xf32>, vector<8x128xf32> -> vector<8x128xf32>
    %c0_48 = arith.constant 0 : index
    %c0_49 = arith.constant 0 : index
    %99 = vector.load %arg8[%c0_48, %c0_49] : memref<1x128xf32, #tpu.memory_space<vmem>>, vector<1x128xf32>
    %100 = vector.broadcast %99 : vector<1x128xf32> to vector<8x128xf32>
    %101 = arith.addf %98, %100 : vector<8x128xf32>
    %c0_50 = arith.constant 0 : index
    %c0_51 = arith.constant 0 : index
    %102 = vector.load %arg11[%c0_50, %c0_51] : memref<8x128xf32, #tpu.memory_space<vmem>>, vector<8x128xf32>
    tpu.vector_store %arg11[%c0_50, %c0_51], %101 {strides = array<i32>} : memref<8x128xf32, #tpu.memory_space<vmem>>, vector<8x128xf32>,
    return
  }
}

</mosaic_0001>

<llo_original>
// kernel: tpu_custom_call.1
$region0: #{tpu_custom_call.1}
  #allocation0 [shape = 'u32[]', space=smem, size = 0x4, offset = 0x4, fixed_abs, tag = 'smem constant byte address 0x4 - core index']
  #allocation1 [shape = 'u32[144,128]{1,0:T(1,128)}', space=vmem, size = 0x12000, scoped, tag = 'internal scratch']
  %s0 = inlined_call_operand.hbm [shape: f32[8,128], index: 0, kind: input, shape index: {}]
  %s1 = inlined_call_operand.hbm [shape: f32[128,128], index: 1, kind: input, shape index: {}]
  %s2 = inlined_call_operand.vmem [shape: f32[1,128], index: 2, kind: input, shape index: {}]
  %s3 = inlined_call_operand.vmem [shape: f32[1,128], index: 3, kind: input, shape index: {}]
  %s4 = inlined_call_operand.hbm [shape: f32[128,128], index: 4, kind: input, shape index: {}]
  %s5 = inlined_call_operand.vmem [shape: f32[1,128], index: 5, kind: input, shape index: {}]
  %s6 = inlined_call_operand.vmem [shape: f32[1,128], index: 6, kind: input, shape index: {}]
  %s7 = inlined_call_operand.hbm [shape: f32[128,128], index: 7, kind: input, shape index: {}]
  %s8 = inlined_call_operand.vmem [shape: f32[1,128], index: 8, kind: input, shape index: {}]
  %s9 = inlined_call_operand.vmem [shape: f32[1,128], index: 9, kind: input, shape index: {}]
  %s10 = inlined_call_operand.vmem [shape: f32[1,128], index: 10, kind: input, shape index: {}]
  %s11 = inlined_call_operand.hbm [shape: f32[8,128], index: 11, kind: output, shape index: {}]
  %s12 = sld [smem:[#allocation0]]
  $region70: #{tpu_custom_call.1} parent=0
    _
  %s14 = ssub.s32 1, %s12
  %s15 = scalar_select 0, %s14, %s12
  $region1: #{tpu_custom_call.1} parent=0
    #allocation2 [shape = 'u8[4096]{0}', space=vmem, size = 0x1000, scoped, tag = 'input window, operand 0, single buffered']
    #allocation3 [shape = 's32[1]{0}', space=sflag, size = 0x4, scoped, tag = 'scoped memory for tpu_custom_call.1']
    #allocation4 [shape = 's32[1]{0}', space=sflag, size = 0x4, scoped, tag = 'scoped memory for tpu_custom_call.1']
    #allocation5 [shape = 'u8[65536]{0}', space=vmem, size = 0x10000, scoped, tag = 'input window, operand 1, single buffered']
    #allocation6 [shape = 's32[1]{0}', space=sflag, size = 0x4, scoped, tag = 'scoped memory for tpu_custom_call.1']
    #allocation7 [shape = 'u8[65536]{0}', space=vmem, size = 0x10000, scoped, tag = 'input window, operand 4, single buffered']
    #allocation8 [shape = 'u8[65536]{0}', space=vmem, size = 0x10000, scoped, tag = 'input window, operand 7, single buffered']
    #allocation9 [shape = 's32[1]{0}', space=sflag, size = 0x4, scoped, tag = 'scoped memory for tpu_custom_call.1']
    #allocation10 [shape = 'u8[4096]{0}', space=vmem, size = 0x1000, scoped, tag = 'output window, operand 0, single buffered']
    %16 = vsyncpa [#allocation3], 0
    %17 = vsyncpa [#allocation6], 0
    %18 = vsyncpa [#allocation9], 0
    %19 = vsyncpa [#allocation4], 0
    // Predicated region
    $region2: #{tpu_custom_call.1} parent=1 // pred_check
      _
    $region3: #{tpu_custom_call.1} parent=1 // pred_check_branch
      %21 = sbr.rel (0) target = $region5
    $region4: #{tpu_custom_call.1} parent=1 // pred_region
      %s23 = ssub.s32 128, 128
      %24 = vsyncadd [#allocation3], %s23
      %s26 = sshll.u32 [#allocation2], 4
      %s27 = int_to_ptr.vmem [resolvable:$true] %s26
      %29 = dma.hbm_to_vmem [thread:$0]  %s0, 128, %s27, [#allocation3]
    $region5: #{tpu_custom_call.1} parent=1 // pred_fallthru
      _
    // Predicated region
    $region6: #{tpu_custom_call.1} parent=1 // pred_check
      _
    $region7: #{tpu_custom_call.1} parent=1 // pred_check_branch
      %31 = sbr.rel (0) target = $region9
    $region8: #{tpu_custom_call.1} parent=1 // pred_region
      %s33 = ssub.s32 2048, 2048
      %34 = vsyncadd [#allocation6], %s33
      %s35 = sshll.u32 [#allocation5], 4
      %s36 = int_to_ptr.vmem [resolvable:$true] %s35
      %41 = dma.hbm_to_vmem [thread:$0]  %s1, 2048, %s36, [#allocation6], 128, 128, 8
    $region9: #{tpu_custom_call.1} parent=1 // pred_fallthru
      _
    // Predicated region
    $region10: #{tpu_custom_call.1} parent=1 // pred_check
      _
    $region11: #{tpu_custom_call.1} parent=1 // pred_check_branch
      %43 = sbr.rel (0) target = $region13
    $region12: #{tpu_custom_call.1} parent=1 // pred_region
      _
    $region13: #{tpu_custom_call.1} parent=1 // pred_fallthru
      _
    // Predicated region
    $region14: #{tpu_custom_call.1} parent=1 // pred_check
      _
    $region15: #{tpu_custom_call.1} parent=1 // pred_check_branch
      %45 = sbr.rel (0) target = $region17
    $region16: #{tpu_custom_call.1} parent=1 // pred_region
      _
    $region17: #{tpu_custom_call.1} parent=1 // pred_fallthru
      _
    // Predicated region
    $region18: #{tpu_custom_call.1} parent=1 // pred_check
      _
    $region19: #{tpu_custom_call.1} parent=1 // pred_check_branch
      %47 = sbr.rel (0) target = $region21
    $region20: #{tpu_custom_call.1} parent=1 // pred_region
      %s49 = ssub.s32 2048, 2048
      %50 = vsyncadd [#allocation6], %s49
      %s51 = sshll.u32 [#allocation7], 4
      %s52 = int_to_ptr.vmem [resolvable:$true] %s51
      %57 = dma.hbm_to_vmem [thread:$0]  %s4, 2048, %s52, [#allocation6], 128, 128, 8
    $region21: #{tpu_custom_call.1} parent=1 // pred_fallthru
      _
    // Predicated region
    $region22: #{tpu_custom_call.1} parent=1 // pred_check
      _
    $region23: #{tpu_custom_call.1} parent=1 // pred_check_branch
      %59 = sbr.rel (0) target = $region25
    $region24: #{tpu_custom_call.1} parent=1 // pred_region
      _
    $region25: #{tpu_custom_call.1} parent=1 // pred_fallthru
      _
    // Predicated region
    $region26: #{tpu_custom_call.1} parent=1 // pred_check
      _
    $region27: #{tpu_custom_call.1} parent=1 // pred_check_branch
      %61 = sbr.rel (0) target = $region29
    $region28: #{tpu_custom_call.1} parent=1 // pred_region
      _
    $region29: #{tpu_custom_call.1} parent=1 // pred_fallthru
      _
    // Predicated region
    $region30: #{tpu_custom_call.1} parent=1 // pred_check
      _
    $region31: #{tpu_custom_call.1} parent=1 // pred_check_branch
      %63 = sbr.rel (0) target = $region33
    $region32: #{tpu_custom_call.1} parent=1 // pred_region
      %s65 = ssub.s32 2048, 2048
      %66 = vsyncadd [#allocation9], %s65
      %s67 = sshll.u32 [#allocation8], 4
      %s68 = int_to_ptr.vmem [resolvable:$true] %s67
      %73 = dma.hbm_to_vmem [thread:$0]  %s7, 2048, %s68, [#allocation9], 128, 128, 8
    $region33: #{tpu_custom_call.1} parent=1 // pred_fallthru
      _
    // Predicated region
    $region34: #{tpu_custom_call.1} parent=1 // pred_check
      _
    $region35: #{tpu_custom_call.1} parent=1 // pred_check_branch
      %75 = sbr.rel (0) target = $region37
    $region36: #{tpu_custom_call.1} parent=1 // pred_region
      _
    $region37: #{tpu_custom_call.1} parent=1 // pred_fallthru
      _
    // Predicated region
    $region38: #{tpu_custom_call.1} parent=1 // pred_check
      _
    $region39: #{tpu_custom_call.1} parent=1 // pred_check_branch
      %77 = sbr.rel (0) target = $region41
    $region40: #{tpu_custom_call.1} parent=1 // pred_region
      _
    $region41: #{tpu_custom_call.1} parent=1 // pred_fallthru
      _
    // Predicated region
    $region42: #{tpu_custom_call.1} parent=1 // pred_check
      _
    $region43: #{tpu_custom_call.1} parent=1 // pred_check_branch
      %79 = sbr.rel (0) target = $region45
    $region44: #{tpu_custom_call.1} parent=1 // pred_region
      _
    $region45: #{tpu_custom_call.1} parent=1 // pred_fallthru
      _
    // Predicated region
    $region46: #{tpu_custom_call.1} parent=1 // pred_check
      _
    $region47: #{tpu_custom_call.1} parent=1 // pred_check_branch
      %81 = sbr.rel (0) target = $region49
    $region48: #{tpu_custom_call.1} parent=1 // pred_region
      %82 = dma.done [#allocation3], 128
    $region49: #{tpu_custom_call.1} parent=1 // pred_fallthru
      _
    // Predicated region
    $region50: #{tpu_custom_call.1} parent=1 // pred_check
      _
    $region51: #{tpu_custom_call.1} parent=1 // pred_check_branch
      %84 = sbr.rel (0) target = $region53
    $region52: #{tpu_custom_call.1} parent=1 // pred_region
      %85 = dma.done [#allocation6], 2048
    $region53: #{tpu_custom_call.1} parent=1 // pred_fallthru
      _
    // Predicated region
    $region54: #{tpu_custom_call.1} parent=1 // pred_check
      _
    $region55: #{tpu_custom_call.1} parent=1 // pred_check_branch
      %87 = sbr.rel (0) target = $region57
    $region56: #{tpu_custom_call.1} parent=1 // pred_region
      %88 = dma.done [#allocation6], 2048
    $region57: #{tpu_custom_call.1} parent=1 // pred_fallthru
      _
    // Predicated region
    $region58: #{tpu_custom_call.1} parent=1 // pred_check
      _
    $region59: #{tpu_custom_call.1} parent=1 // pred_check_branch
      %90 = sbr.rel (0) target = $region61
    $region60: #{tpu_custom_call.1} parent=1 // pred_region
      %91 = dma.done [#allocation9], 2048
    $region61: #{tpu_custom_call.1} parent=1 // pred_fallthru
      _
    %v92 = vld [vmem:[#allocation2] sm:$0xff]
    %v93 = vld [vmem:[#allocation5] sm:$0xff]
    %v94 = vld [vmem:[#allocation5 + $0x8] sm:$0xff]
    %v95 = vld [vmem:[#allocation5 + $0x10] sm:$0xff]
    %v96 = vld [vmem:[#allocation5 + $0x18] sm:$0xff]
    %v97 = vld [vmem:[#allocation5 + $0x20] sm:$0xff]
    %v98 = vld [vmem:[#allocation5 + $0x28] sm:$0xff]
    %v99 = vld [vmem:[#allocation5 + $0x30] sm:$0xff]
    %v100 = vld [vmem:[#allocation5 + $0x38] sm:$0xff]
    %v101 = vld [vmem:[#allocation5 + $0x40] sm:$0xff]
    %v102 = vld [vmem:[#allocation5 + $0x48] sm:$0xff]
    %v103 = vld [vmem:[#allocation5 + $0x50] sm:$0xff]
    %v104 = vld [vmem:[#allocation5 + $0x58] sm:$0xff]
    %v105 = vld [vmem:[#allocation5 + $0x60] sm:$0xff]
    %v106 = vld [vmem:[#allocation5 + $0x68] sm:$0xff]
    %v107 = vld [vmem:[#allocation5 + $0x70] sm:$0xff]
    %v108 = vld [vmem:[#allocation5 + $0x78] sm:$0xff]
    %109 = vmatprep.subr.mxu0 0.0
    %110 = vmatpush1.msra.mxu0 %v93
    %111 = vmatprep.subr.mxu0 0.0
    %112 = vmatpush1.msra.mxu0 %v94
    %113 = vmatprep.subr.mxu0 0.0
    %114 = vmatpush1.msra.mxu0 %v95
    %115 = vmatprep.subr.mxu0 0.0
    %116 = vmatpush1.msra.mxu0 %v96
    %117 = vmatprep.subr.mxu0 0.0
    %118 = vmatpush1.msra.mxu0 %v97
    %119 = vmatprep.subr.mxu0 0.0
    %120 = vmatpush1.msra.mxu0 %v98
    %121 = vmatprep.subr.mxu0 0.0
    %122 = vmatpush1.msra.mxu0 %v99
    %123 = vmatprep.subr.mxu0 0.0
    %124 = vmatpush1.msra.mxu0 %v100
    %125 = vmatprep.subr.mxu0 0.0
    %126 = vmatpush1.msra.mxu0 %v101
    %127 = vmatprep.subr.mxu0 0.0
    %128 = vmatpush1.msra.mxu0 %v102
    %129 = vmatprep.subr.mxu0 0.0
    %130 = vmatpush1.msra.mxu0 %v103
    %131 = vmatprep.subr.mxu0 0.0
    %132 = vmatpush1.msra.mxu0 %v104
    %133 = vmatprep.subr.mxu0 0.0
    %134 = vmatpush1.msra.mxu0 %v105
    %135 = vmatprep.subr.mxu0 0.0
    %136 = vmatpush1.msra.mxu0 %v106
    %137 = vmatprep.subr.mxu0 0.0
    %138 = vmatpush1.msra.mxu0 %v107
    %139 = vmatprep.subr.mxu0 0.0
    %140 = vmatpush1.msra.mxu0 %v108
    %141 = vmatprep.subr.mxu0 0.0
    %142 = vmatpush1.msra.mxu0 0.0
    %143 = vmatprep.subr.mxu0 0.0
    %144 = vmatpush1.msra.mxu0 0.0
    %145 = vmatprep.subr.mxu0 0.0
    %146 = vmatpush1.msra.mxu0 0.0
    %147 = vmatprep.subr.mxu0 0.0
    %148 = vmatpush1.msra.mxu0 0.0
    %149 = vmatprep.subr.mxu0 0.0
    %150 = vmatpush1.msra.mxu0 0.0
    %151 = vmatprep.subr.mxu0 0.0
    %152 = vmatpush1.msra.mxu0 0.0
    %153 = vmatprep.subr.mxu0 0.0
    %154 = vmatpush1.msra.mxu0 0.0
    %155 = vmatprep.subr.mxu0 0.0
    %156 = vmatpush1.msra.mxu0 0.0
    %157 = vmatprep.subr.mxu0 0.0
    %158 = vmatpush1.msra.mxu0 0.0
    %159 = vmatprep.subr.mxu0 0.0
    %160 = vmatpush1.msra.mxu0 0.0
    %161 = vmatprep.subr.mxu0 0.0
    %162 = vmatpush1.msra.mxu0 0.0
    %163 = vmatprep.subr.mxu0 0.0
    %164 = vmatpush1.msra.mxu0 0.0
    %165 = vmatprep.subr.mxu0 0.0
    %166 = vmatpush1.msra.mxu0 0.0
    %167 = vmatprep.subr.mxu0 0.0
    %168 = vmatpush1.msra.mxu0 0.0
    %169 = vmatprep.subr.mxu0 0.0
    %170 = vmatpush1.msra.mxu0 0.0
    %171 = vmatprep.subr.mxu0 0.0
    %172 = vmatpush1.msra.mxu0 0.0
    %173 = vmatprep.mubr.f32.mxu0 0.0
    %174 = vmatmul.mubr.f32.gmra.mrb[0].mxu0 %v92
    %v175 = vpop.f32.mrb[0].mxu0
    %v176 = vadd.f32 0.0, %v175
    %v177 = vpop.f32.mrb[0].mxu0
    %178 = vdwg.mxu0
    %v179 = vrot.slane %v176, 4
    %v180 = vadd.f32 %v176, %v179
    %v181 = vrot.slane %v180, 2
    %v182 = vadd.f32 %v180, %v181
    %v183 = vrot.slane %v182, 1
    %v184 = vadd.f32 %v182, %v183
    %v185 = vmul.f32 %v176, %v176
    %v186 = vrot.slane %v185, 4
    %v187 = vadd.f32 %v185, %v186
    %v188 = vrot.slane %v187, 2
    %v189 = vadd.f32 %v187, %v188
    %v190 = vrot.slane %v189, 1
    %v191 = vadd.f32 %v189, %v190
    %v192 = vmul.f32 %v184, 0.125
    %v193 = vmul.f32 %v191, 0.125
    %v194 = vmul.f32 %v192, %v192
    %v195 = vsub.f32 %v193, %v194
    %v196 = vmax.f32 %v195, 0.0
    %v197 = vld [vmem:[%s2] sm:$0x1]
    %v198 = vadd.f32 %v196, 1e-05
    %v199 = vrsqrt.pop %v198
    %v200 = vmul.f32 %v197, %v199
    %v201 = vld [vmem:[%s3] sm:$0x1]
    %v202 = vmul.f32 %v192, %v200
    %v203 = vsub.f32 %v201, %v202
    %v205 = vlaneseq
    %v206 = vshrl.u32 %v205, 7
    %v207 = vsub.s32 0, %v206
    %v208 = vrot.slane %v200, %v207
    %v210 = vmul.f32 %v176, %v208
    %v212 = vlaneseq
    %v213 = vshrl.u32 %v212, 7
    %v214 = vsub.s32 0, %v213
    %v215 = vrot.slane %v203, %v214
    %v217 = vadd.f32 %v210, %v215
    %v218 = vtanh.pop %v217
    %v219 = vld [vmem:[#allocation7] sm:$0xff]
    %v220 = vld [vmem:[#allocation7 + $0x8] sm:$0xff]
    %v221 = vld [vmem:[#allocation7 + $0x10] sm:$0xff]
    %v222 = vld [vmem:[#allocation7 + $0x18] sm:$0xff]
    %v223 = vld [vmem:[#allocation7 + $0x20] sm:$0xff]
    %v224 = vld [vmem:[#allocation7 + $0x28] sm:$0xff]
    %v225 = vld [vmem:[#allocation7 + $0x30] sm:$0xff]
    %v226 = vld [vmem:[#allocation7 + $0x38] sm:$0xff]
    %v227 = vld [vmem:[#allocation7 + $0x40] sm:$0xff]
    %v228 = vld [vmem:[#allocation7 + $0x48] sm:$0xff]
    %v229 = vld [vmem:[#allocation7 + $0x50] sm:$0xff]
    %v230 = vld [vmem:[#allocation7 + $0x58] sm:$0xff]
    %v231 = vld [vmem:[#allocation7 + $0x60] sm:$0xff]
    %v232 = vld [vmem:[#allocation7 + $0x68] sm:$0xff]
    %v233 = vld [vmem:[#allocation7 + $0x70] sm:$0xff]
    %v234 = vld [vmem:[#allocation7 + $0x78] sm:$0xff]
    %235 = vmatprep.subr.mxu0 0.0
    %236 = vmatpush1.msra.mxu0 %v219
    %237 = vmatprep.subr.mxu0 0.0
    %238 = vmatpush1.msra.mxu0 %v220
    %239 = vmatprep.subr.mxu0 0.0
    %240 = vmatpush1.msra.mxu0 %v221
    %241 = vmatprep.subr.mxu0 0.0
    %242 = vmatpush1.msra.mxu0 %v222
    %243 = vmatprep.subr.mxu0 0.0
    %244 = vmatpush1.msra.mxu0 %v223
    %245 = vmatprep.subr.mxu0 0.0
    %246 = vmatpush1.msra.mxu0 %v224
    %247 = vmatprep.subr.mxu0 0.0
    %248 = vmatpush1.msra.mxu0 %v225
    %249 = vmatprep.subr.mxu0 0.0
    %250 = vmatpush1.msra.mxu0 %v226
    %251 = vmatprep.subr.mxu0 0.0
    %252 = vmatpush1.msra.mxu0 %v227
    %253 = vmatprep.subr.mxu0 0.0
    %254 = vmatpush1.msra.mxu0 %v228
    %255 = vmatprep.subr.mxu0 0.0
    %256 = vmatpush1.msra.mxu0 %v229
    %257 = vmatprep.subr.mxu0 0.0
    %258 = vmatpush1.msra.mxu0 %v230
    %259 = vmatprep.subr.mxu0 0.0
    %260 = vmatpush1.msra.mxu0 %v231
    %261 = vmatprep.subr.mxu0 0.0
    %262 = vmatpush1.msra.mxu0 %v232
    %263 = vmatprep.subr.mxu0 0.0
    %264 = vmatpush1.msra.mxu0 %v233
    %265 = vmatprep.subr.mxu0 0.0
    %266 = vmatpush1.msra.mxu0 %v234
    %267 = vmatprep.subr.mxu0 0.0
    %268 = vmatpush1.msra.mxu0 0.0
    %269 = vmatprep.subr.mxu0 0.0
    %270 = vmatpush1.msra.mxu0 0.0
    %271 = vmatprep.subr.mxu0 0.0
    %272 = vmatpush1.msra.mxu0 0.0
    %273 = vmatprep.subr.mxu0 0.0
    %274 = vmatpush1.msra.mxu0 0.0
    %275 = vmatprep.subr.mxu0 0.0
    %276 = vmatpush1.msra.mxu0 0.0
    %277 = vmatprep.subr.mxu0 0.0
    %278 = vmatpush1.msra.mxu0 0.0
    %279 = vmatprep.subr.mxu0 0.0
    %280 = vmatpush1.msra.mxu0 0.0
    %281 = vmatprep.subr.mxu0 0.0
    %282 = vmatpush1.msra.mxu0 0.0
    %283 = vmatprep.subr.mxu0 0.0
    %284 = vmatpush1.msra.mxu0 0.0
    %285 = vmatprep.subr.mxu0 0.0
    %286 = vmatpush1.msra.mxu0 0.0
    %287 = vmatprep.subr.mxu0 0.0
    %288 = vmatpush1.msra.mxu0 0.0
    %289 = vmatprep.subr.mxu0 0.0
    %290 = vmatpush1.msra.mxu0 0.0
    %291 = vmatprep.subr.mxu0 0.0
    %292 = vmatpush1.msra.mxu0 0.0
    %293 = vmatprep.subr.mxu0 0.0
    %294 = vmatpush1.msra.mxu0 0.0
    %295 = vmatprep.subr.mxu0 0.0
    %296 = vmatpush1.msra.mxu0 0.0
    %297 = vmatprep.subr.mxu0 0.0
    %298 = vmatpush1.msra.mxu0 0.0
    %299 = vmatprep.mubr.f32.mxu0 0.0
    %300 = vmatmul.mubr.f32.gmra.mrb[0].mxu0 %v218
    %v301 = vpop.f32.mrb[0].mxu0
    %v302 = vadd.f32 0.0, %v301
    %v303 = vpop.f32.mrb[0].mxu0
    %304 = vdwg.mxu0
    %v305 = vrot.slane %v302, 4
    %v306 = vadd.f32 %v302, %v305
    %v307 = vrot.slane %v306, 2
    %v308 = vadd.f32 %v306, %v307
    %v309 = vrot.slane %v308, 1
    %v310 = vadd.f32 %v308, %v309
    %v311 = vmul.f32 %v302, %v302
    %v312 = vrot.slane %v311, 4
    %v313 = vadd.f32 %v311, %v312
    %v314 = vrot.slane %v313, 2
    %v315 = vadd.f32 %v313, %v314
    %v316 = vrot.slane %v315, 1
    %v317 = vadd.f32 %v315, %v316
    %v318 = vmul.f32 %v310, 0.125
    %v319 = vmul.f32 %v317, 0.125
    %v320 = vmul.f32 %v318, %v318
    %v321 = vsub.f32 %v319, %v320
    %v322 = vmax.f32 %v321, 0.0
    %v323 = vld [vmem:[%s5] sm:$0x1]
    %v324 = vadd.f32 %v322, 1e-05
    %v325 = vrsqrt.pop %v324
    %v326 = vmul.f32 %v323, %v325
    %v327 = vld [vmem:[%s6] sm:$0x1]
    %v328 = vmul.f32 %v318, %v326
    %v329 = vsub.f32 %v327, %v328
    %v331 = vlaneseq
    %v332 = vshrl.u32 %v331, 7
    %v333 = vsub.s32 0, %v332
    %v334 = vrot.slane %v326, %v333
    %v336 = vmul.f32 %v302, %v334
    %v338 = vlaneseq
    %v339 = vshrl.u32 %v338, 7
    %v340 = vsub.s32 0, %v339
    %v341 = vrot.slane %v329, %v340
    %v343 = vadd.f32 %v336, %v341
    %v344 = vmul.f32 %v343, 0.5
    %v345 = vtanh.pop %v344
    %v346 = vmul.f32 %v345, 0.5
    %v347 = vadd.f32 %v346, 0.5
    %v348 = vld [vmem:[#allocation8] sm:$0xff]
    %v349 = vld [vmem:[#allocation8 + $0x8] sm:$0xff]
    %v350 = vld [vmem:[#allocation8 + $0x10] sm:$0xff]
    %v351 = vld [vmem:[#allocation8 + $0x18] sm:$0xff]
    %v352 = vld [vmem:[#allocation8 + $0x20] sm:$0xff]
    %v353 = vld [vmem:[#allocation8 + $0x28] sm:$0xff]
    %v354 = vld [vmem:[#allocation8 + $0x30] sm:$0xff]
    %v355 = vld [vmem:[#allocation8 + $0x38] sm:$0xff]
    %v356 = vld [vmem:[#allocation8 + $0x40] sm:$0xff]
    %v357 = vld [vmem:[#allocation8 + $0x48] sm:$0xff]
    %v358 = vld [vmem:[#allocation8 + $0x50] sm:$0xff]
    %v359 = vld [vmem:[#allocation8 + $0x58] sm:$0xff]
    %v360 = vld [vmem:[#allocation8 + $0x60] sm:$0xff]
    %v361 = vld [vmem:[#allocation8 + $0x68] sm:$0xff]
    %v362 = vld [vmem:[#allocation8 + $0x70] sm:$0xff]
    %v363 = vld [vmem:[#allocation8 + $0x78] sm:$0xff]
    %364 = vmatprep.subr.mxu0 0.0
    %365 = vmatpush1.msra.mxu0 %v348
    %366 = vmatprep.subr.mxu0 0.0
    %367 = vmatpush1.msra.mxu0 %v349
    %368 = vmatprep.subr.mxu0 0.0
    %369 = vmatpush1.msra.mxu0 %v350
    %370 = vmatprep.subr.mxu0 0.0
    %371 = vmatpush1.msra.mxu0 %v351
    %372 = vmatprep.subr.mxu0 0.0
    %373 = vmatpush1.msra.mxu0 %v352
    %374 = vmatprep.subr.mxu0 0.0
    %375 = vmatpush1.msra.mxu0 %v353
    %376 = vmatprep.subr.mxu0 0.0
    %377 = vmatpush1.msra.mxu0 %v354
    %378 = vmatprep.subr.mxu0 0.0
    %379 = vmatpush1.msra.mxu0 %v355
    %380 = vmatprep.subr.mxu0 0.0
    %381 = vmatpush1.msra.mxu0 %v356
    %382 = vmatprep.subr.mxu0 0.0
    %383 = vmatpush1.msra.mxu0 %v357
    %384 = vmatprep.subr.mxu0 0.0
    %385 = vmatpush1.msra.mxu0 %v358
    %386 = vmatprep.subr.mxu0 0.0
    %387 = vmatpush1.msra.mxu0 %v359
    %388 = vmatprep.subr.mxu0 0.0
    %389 = vmatpush1.msra.mxu0 %v360
    %390 = vmatprep.subr.mxu0 0.0
    %391 = vmatpush1.msra.mxu0 %v361
    %392 = vmatprep.subr.mxu0 0.0
    %393 = vmatpush1.msra.mxu0 %v362
    %394 = vmatprep.subr.mxu0 0.0
    %395 = vmatpush1.msra.mxu0 %v363
    %396 = vmatprep.subr.mxu0 0.0
    %397 = vmatpush1.msra.mxu0 0.0
    %398 = vmatprep.subr.mxu0 0.0
    %399 = vmatpush1.msra.mxu0 0.0
    %400 = vmatprep.subr.mxu0 0.0
    %401 = vmatpush1.msra.mxu0 0.0
    %402 = vmatprep.subr.mxu0 0.0
    %403 = vmatpush1.msra.mxu0 0.0
    %404 = vmatprep.subr.mxu0 0.0
    %405 = vmatpush1.msra.mxu0 0.0
    %406 = vmatprep.subr.mxu0 0.0
    %407 = vmatpush1.msra.mxu0 0.0
    %408 = vmatprep.subr.mxu0 0.0
    %409 = vmatpush1.msra.mxu0 0.0
    %410 = vmatprep.subr.mxu0 0.0
    %411 = vmatpush1.msra.mxu0 0.0
    %412 = vmatprep.subr.mxu0 0.0
    %413 = vmatpush1.msra.mxu0 0.0
    %414 = vmatprep.subr.mxu0 0.0
    %415 = vmatpush1.msra.mxu0 0.0
    %416 = vmatprep.subr.mxu0 0.0
    %417 = vmatpush1.msra.mxu0 0.0
    %418 = vmatprep.subr.mxu0 0.0
    %419 = vmatpush1.msra.mxu0 0.0
    %420 = vmatprep.subr.mxu0 0.0
    %421 = vmatpush1.msra.mxu0 0.0
    %422 = vmatprep.subr.mxu0 0.0
    %423 = vmatpush1.msra.mxu0 0.0
    %424 = vmatprep.subr.mxu0 0.0
    %425 = vmatpush1.msra.mxu0 0.0
    %426 = vmatprep.subr.mxu0 0.0
    %427 = vmatpush1.msra.mxu0 0.0
    %428 = vmatprep.mubr.f32.mxu0 0.0
    %429 = vmatmul.mubr.f32.gmra.mrb[0].mxu0 %v347
    %v430 = vpop.f32.mrb[0].mxu0
    %v431 = vadd.f32 0.0, %v430
    %v432 = vpop.f32.mrb[0].mxu0
    %433 = vdwg.mxu0
    %v434 = vrot.slane %v431, 4
    %v435 = vadd.f32 %v431, %v434
    %v436 = vrot.slane %v435, 2
    %v437 = vadd.f32 %v435, %v436
    %v438 = vrot.slane %v437, 1
    %v439 = vadd.f32 %v437, %v438
    %v440 = vmul.f32 %v431, %v431
    %v441 = vrot.slane %v440, 4
    %v442 = vadd.f32 %v440, %v441
    %v443 = vrot.slane %v442, 2
    %v444 = vadd.f32 %v442, %v443
    %v445 = vrot.slane %v444, 1
    %v446 = vadd.f32 %v444, %v445
    %v447 = vmul.f32 %v439, 0.125
    %v448 = vmul.f32 %v446, 0.125
    %v449 = vmul.f32 %v447, %v447
    %v450 = vsub.f32 %v448, %v449
    %v451 = vmax.f32 %v450, 0.0
    %v452 = vld [vmem:[%s9] sm:$0x1]
    %v453 = vadd.f32 %v451, 1e-05
    %v454 = vrsqrt.pop %v453
    %v455 = vmul.f32 %v452, %v454
    %v456 = vld [vmem:[%s10] sm:$0x1]
    %v457 = vmul.f32 %v447, %v455
    %v458 = vsub.f32 %v456, %v457
    %v460 = vlaneseq
    %v461 = vshrl.u32 %v460, 7
    %v462 = vsub.s32 0, %v461
    %v463 = vrot.slane %v455, %v462
    %v465 = vmul.f32 %v431, %v463
    %v467 = vlaneseq
    %v468 = vshrl.u32 %v467, 7
    %v469 = vsub.s32 0, %v468
    %v470 = vrot.slane %v458, %v469
    %v472 = vadd.f32 %v465, %v470
    %v473 = vmul.f32 %v472, 0.5
    %v474 = vtanh.pop %v473
    %v475 = vmul.f32 %v474, 0.5
    %v476 = vadd.f32 %v475, 0.5
    %v477 = vld [vmem:[%s8] sm:$0x1]
    %v479 = vlaneseq
    %v480 = vshrl.u32 %v479, 7
    %v481 = vsub.s32 0, %v480
    %v482 = vrot.slane %v477, %v481
    %484 = vmatprep.subr.mxu0 0.0
    %485 = vmatpush1.msra.mxu0 %v348
    %486 = vmatprep.subr.mxu0 0.0
    %487 = vmatpush1.msra.mxu0 %v349
    %488 = vmatprep.subr.mxu0 0.0
    %489 = vmatpush1.msra.mxu0 %v350
    %490 = vmatprep.subr.mxu0 0.0
    %491 = vmatpush1.msra.mxu0 %v351
    %492 = vmatprep.subr.mxu0 0.0
    %493 = vmatpush1.msra.mxu0 %v352
    %494 = vmatprep.subr.mxu0 0.0
    %495 = vmatpush1.msra.mxu0 %v353
    %496 = vmatprep.subr.mxu0 0.0
    %497 = vmatpush1.msra.mxu0 %v354
    %498 = vmatprep.subr.mxu0 0.0
    %499 = vmatpush1.msra.mxu0 %v355
    %500 = vmatprep.subr.mxu0 0.0
    %501 = vmatpush1.msra.mxu0 %v356
    %502 = vmatprep.subr.mxu0 0.0
    %503 = vmatpush1.msra.mxu0 %v357
    %504 = vmatprep.subr.mxu0 0.0
    %505 = vmatpush1.msra.mxu0 %v358
    %506 = vmatprep.subr.mxu0 0.0
    %507 = vmatpush1.msra.mxu0 %v359
    %508 = vmatprep.subr.mxu0 0.0
    %509 = vmatpush1.msra.mxu0 %v360
    %510 = vmatprep.subr.mxu0 0.0
    %511 = vmatpush1.msra.mxu0 %v361
    %512 = vmatprep.subr.mxu0 0.0
    %513 = vmatpush1.msra.mxu0 %v362
    %514 = vmatprep.subr.mxu0 0.0
    %515 = vmatpush1.msra.mxu0 %v363
    %516 = vmatprep.subr.mxu0 0.0
    %517 = vmatpush1.msra.mxu0 0.0
    %518 = vmatprep.subr.mxu0 0.0
    %519 = vmatpush1.msra.mxu0 0.0
    %520 = vmatprep.subr.mxu0 0.0
    %521 = vmatpush1.msra.mxu0 0.0
    %522 = vmatprep.subr.mxu0 0.0
    %523 = vmatpush1.msra.mxu0 0.0
    %524 = vmatprep.subr.mxu0 0.0
    %525 = vmatpush1.msra.mxu0 0.0
    %526 = vmatprep.subr.mxu0 0.0
    %527 = vmatpush1.msra.mxu0 0.0
    %528 = vmatprep.subr.mxu0 0.0
    %529 = vmatpush1.msra.mxu0 0.0
    %530 = vmatprep.subr.mxu0 0.0
    %531 = vmatpush1.msra.mxu0 0.0
    %532 = vmatprep.subr.mxu0 0.0
    %533 = vmatpush1.msra.mxu0 0.0
    %534 = vmatprep.subr.mxu0 0.0
    %535 = vmatpush1.msra.mxu0 0.0
    %536 = vmatprep.subr.mxu0 0.0
    %537 = vmatpush1.msra.mxu0 0.0
    %538 = vmatprep.subr.mxu0 0.0
    %539 = vmatpush1.msra.mxu0 0.0
    %540 = vmatprep.subr.mxu0 0.0
    %541 = vmatpush1.msra.mxu0 0.0
    %542 = vmatprep.subr.mxu0 0.0
    %543 = vmatpush1.msra.mxu0 0.0
    %544 = vmatprep.subr.mxu0 0.0
    %545 = vmatpush1.msra.mxu0 0.0
    %546 = vmatprep.subr.mxu0 0.0
    %547 = vmatpush1.msra.mxu0 0.0
    %548 = vmatprep.mubr.f32.mxu0 0.0
    %549 = vmatmul.mubr.f32.gmra.mrb[0].mxu0 %v476
    %v550 = vpop.f32.mrb[0].mxu0
    %v551 = vadd.f32 %v482, %v550
    %v552 = vpop.f32.mrb[0].mxu0
    %553 = vdwg.mxu0
    %554 = vst [vmem:[#allocation10] sm:$0xff] %v551
    // Predicated region
    $region62: #{tpu_custom_call.1} parent=1 // pred_check
      _
    $region63: #{tpu_custom_call.1} parent=1 // pred_check_branch
      %556 = sbr.rel (0) target = $region65
    $region64: #{tpu_custom_call.1} parent=1 // pred_region
      %s558 = ssub.s32 128, 128
      %559 = vsyncadd [#allocation4], %s558
      %s561 = sshll.u32 [#allocation10], 4
      %s562 = int_to_ptr.vmem [resolvable:$true] %s561
      %564 = dma.vmem_to_hbm [thread:$0]  %s562, 128, %s11, [#allocation4]
    $region65: #{tpu_custom_call.1} parent=1 // pred_fallthru
      _
    // Predicated region
    $region66: #{tpu_custom_call.1} parent=1 // pred_check
      _
    $region67: #{tpu_custom_call.1} parent=1 // pred_check_branch
      %566 = sbr.rel (0) target = $region69
    $region68: #{tpu_custom_call.1} parent=1 // pred_region
      %567 = dma.done [#allocation4], 128
    $region69: #{tpu_custom_call.1} parent=1 // pred_fallthru
      _
    %568 = vsyncpa [#allocation3], 1
    %569 = vsyncpa [#allocation6], 1
    %570 = vsyncpa [#allocation9], 1
    %571 = vsyncpa [#allocation4], 1

</llo_original>
